<compile_context>
chip_gen: v6e
topology: v6e:2x2x1
jax: 0.10.0
libtpu: 0.0.40
codegen_flags: <defaults>
</compile_context>

<pallas_src>
import functools

import jax
import jax.numpy as jnp
from jax.experimental import pallas as pl
from jax.experimental.pallas import tpu as pltpu

_ACC_LANES = 128            # lane width of the resident partial-sum accumulators
_MAX_FOLD = 256             # max unrolled lane-fold slices -> tm <= 32768
_MIB = 1024 * 1024


def _round_up(x, m):
    return ((x + m - 1) // m) * m


def _cdiv(a, b):
    return -(-a // b)


def _tpu_limits():
    """(per-core VMEM capacity bytes, TensorCore count) with safe fallbacks."""
    vmem_cap = 64 * _MIB          # conservative default (v7x per-core VMEM)
    cores = 2                     # extra split is a harmless serial loop on 1-TC chips
    try:
        info = pltpu.get_tpu_info()
        vmem_cap = int(getattr(info, "vmem_capacity_bytes", vmem_cap)) or vmem_cap
        for attr in ("num_cores", "core_count", "num_tensorcores", "tensorcore_count"):
            n = getattr(info, attr, None)
            if n:
                cores = int(n)
                break
    except Exception:             # keep the wrapper usable if the query fails
        pass
    return vmem_cap, cores


def _pmf_loss_kernel(r_ref, u_ref, pt_ref, vt_ref, err_ref, regv_ref, pu_ref, *,
                     m_total):
    c = pl.program_id(0)          # item-range split (TensorCores on multi-core chips)
    j = pl.program_id(1)          # item-tile step inside the split (reduction axis)
    steps = pl.num_programs(1)

    @pl.when(j == 0)
    def _():
        pu_ref[...] = pt_ref[...] * u_ref[...]        # grid-invariant P^T * u, hoisted
        err_ref[...] = jnp.zeros_like(err_ref)
        regv_ref[...] = jnp.zeros_like(regv_ref)

    r = r_ref[...]                # (N, TM) tile of R (unpadded in HBM)
    vt = vt_ref[...]              # (K, TM) lane-dense tile of v^T

    tm = r.shape[-1]
    # Column-validity mask for the ragged last tile: R / v^T are not padded in
    # HBM, so the clamped block DMA leaves stale data past column M.
    tile = c * steps + j
    col = jax.lax.broadcasted_iota(jnp.int32, (1, tm), 1) + tile * tm
    valid = col < m_total         # (1, TM); broadcasts over rows

    # predicted = (P^T * u) @ v^T, contracted over K, on the MXU (lane-dense RHS).
    pred = jnp.dot(pu_ref[...], vt, preferred_element_type=jnp.float32)   # (N, TM)
    d = jnp.where((r != 0.0) & valid, r - pred, 0.0)  # fused non-zero + bounds mask
    d2 = d * d
    # TODO(synk): the reference calls an undefined helper `trace(X)`; we use the
    # standard PMF regularizer trace(X @ X.T) == ||X||_F^2 (sum of squares).
    vsq = jnp.where(valid, vt * vt, 0.0)              # (K, TM), full 128-lane occupancy

    # Fold TM -> 128 lanes with tile-aligned static slices: pure VPU adds, no
    # per-step cross-lane XLU reduce and no narrow masked stores.
    err_part = d2[:, 0:_ACC_LANES]
    reg_part = vsq[:, 0:_ACC_LANES]
    for s in range(1, tm // _ACC_LANES):
        sl = slice(s * _ACC_LANES, (s + 1) * _ACC_LANES)
        err_part = err_part + d2[:, sl]
        reg_part = reg_part + vsq[:, sl]

    err_ref[...] += err_part[None]
    regv_ref[...] += reg_part[None]


def pmf_loss(R, u_features, v_features, alpha, Y, P, Q,
             lam_u=0.1, lam_v=0.1, lam_p=0.1, lam_q=0.1, tm=None):
    # alpha / Y / Q / lam_q never reach the reference's returned loss; keep them
    # in the signature but do not transfer them to the TPU kernel.
    del alpha, Y, Q, lam_q

    R = jnp.asarray(R, jnp.float32)               # (N, M) ratings, 0 == missing
    u = jnp.asarray(u_features, jnp.float32)      # (N, K)
    pt = jnp.asarray(P, jnp.float32).T            # torch.t(P) -> (N, K); tiny layout glue
    vt = jnp.asarray(v_features, jnp.float32).T   # (K, M); lane-dense item stream

    N, M = R.shape
    K = u.shape[1]
    # NOTE: the user axis is not tiled; for very large N add a second parallel
    # grid axis over user blocks (not needed while the (N, tm) block fits VMEM).

    vmem_cap, num_cores = _tpu_limits()
    if vmem_cap <= 64 * _MIB:     # v7x-class (64 MiB/core): leave compiler headroom
        vmem_limit = 40 * _MIB
    else:                         # v5e / v6e (128 MiB): spend the headroom on bigger tiles
        vmem_limit = 96 * _MIB
    tile_budget = vmem_limit - 6 * _MIB

    # Per-item-column VMEM bytes: double-buffered R and v^T streams plus the f32
    # intermediates (pred / d / d2 / vsq) materialized inside the kernel.
    per_col_bytes = 4 * (5 * N + 4 * K)
    if tm is None:
        tm = (tile_budget // per_col_bytes) // _ACC_LANES * _ACC_LANES
        tm = min(tm, _MAX_FOLD * _ACC_LANES)      # bound unrolled fold / trace length
    tm = max(_ACC_LANES, _round_up(int(tm), _ACC_LANES))

    # Split the item range across real TensorCores (v7x megacore); keep a single
    # core when the chip has one TC or M is too small to be worth sharding.
    split = num_cores if (num_cores > 1 and _cdiv(M, _ACC_LANES) >= num_cores) else 1
    tm = min(tm, _round_up(_cdiv(M, split), _ACC_LANES))   # <= one core's share
    total_tiles = _cdiv(M, tm)
    steps = _cdiv(total_tiles, split)
    last_tile = total_tiles - 1   # virtual tiles past M are clamped here and fully masked

    def _tile_idx(c, j):
        return jnp.minimum(c * steps + j, last_tile)

    cost = pl.CostEstimate(
        flops=2 * N * M * K + 6 * N * M + 2 * M * K,
        transcendentals=0,
        bytes_accessed=4 * (N * M + M * K + 2 * N * K + split * (N + K) * _ACC_LANES))

    err, regv = pl.pallas_call(
        functools.partial(_pmf_loss_kernel, m_total=M),
        out_shape=(jax.ShapeDtypeStruct((split, N, _ACC_LANES), jnp.float32),
                   jax.ShapeDtypeStruct((split, K, _ACC_LANES), jnp.float32)),
        grid=(split, steps),
        in_specs=[
            pl.BlockSpec((N, tm), lambda c, j: (0, _tile_idx(c, j))),   # R
            pl.BlockSpec((N, K), lambda c, j: (0, 0)),                  # u_features
            pl.BlockSpec((N, K), lambda c, j: (0, 0)),                  # P^T
            pl.BlockSpec((K, tm), lambda c, j: (0, _tile_idx(c, j))),   # v^T
        ],
        out_specs=(pl.BlockSpec((1, N, _ACC_LANES), lambda c, j: (c, 0, 0)),
                   pl.BlockSpec((1, K, _ACC_LANES), lambda c, j: (c, 0, 0))),
        scratch_shapes=[pltpu.VMEM((N, K), jnp.float32)],               # P^T * u
        compiler_params=pltpu.CompilerParams(
            dimension_semantics=("parallel", "arbitrary"),
            vmem_limit_bytes=int(vmem_limit)),
        cost_estimate=cost,
    )(R, u, pt, vt)

    # Single cross-lane collapse, the tiny u/P regularizers, and the global 1/2
    # happen once outside the kernel (u, P are (N,K) -- negligible HBM traffic).
    loss = (jnp.sum(err)
            + lam_v * jnp.sum(regv)
            + lam_u * jnp.sum(u * u)
            + lam_p * jnp.sum(pt * pt))
    return 0.5 * loss


def pmf_loss_ref(R, u, v, alpha, Y, P, Q,
                 lam_u=0.1, lam_v=0.1, lam_p=0.1, lam_q=0.1):
    """Plain-JAX replica of the PyTorch forward (for validation)."""
    nz = (R != 0).astype(jnp.float32)
    pred = jnp.matmul(P.T * u, v.T)
    pe = jnp.sum(((R - pred) ** 2) * nz) / 2
    tr = lambda x: jnp.sum(x * x)            # trace(X X^T) == ||X||_F^2
    return pe + lam_u * tr(u) / 2 + lam_v * tr(v) / 2 + lam_p * tr(P) / 2


if __name__ == "__main__":
    key = jax.random.PRNGKey(0)
    alpha = 0.5

    def make_inputs(N, M, K, scale):
        ks = jax.random.split(key, 8)
        R = (jax.random.normal(ks[0], (N, M)) *
             jax.random.bernoulli(ks[1], 0.7, (N, M))).astype(jnp.float32)
        Y = (jax.random.normal(ks[2], (N, M)) *
             jax.random.bernoulli(ks[3], 0.5, (N, M))).astype(jnp.float32)
        u = (scale * jax.random.normal(ks[4], (N, K))).astype(jnp.float32)
        v = (scale * jax.random.normal(ks[5], (M, K))).astype(jnp.float32)
        P = (scale * jax.random.normal(ks[6], (K, N))).astype(jnp.float32)
        Q = (scale * jax.random.normal(ks[7], (K, N))).astype(jnp.float32)
        return R, u, v, Y, P, Q

    configs = [
        dict(N=16, M=1024, K=8, tm=None, scale=0.1),   # auto tile
        dict(N=16, M=1024, K=8, tm=256, scale=0.1),    # forced multi-step accumulation
        dict(N=13, M=200, K=8, tm=None, scale=1.0),    # unaligned N, ragged item tail
        dict(N=13, M=1500, K=16, tm=256, scale=0.1),   # multi-step + ragged tail, K=16
        dict(N=13, M=1500, K=8, tm=512, scale=0.1),    # odd tile count (clamped OOB tile)
    ]
    for cfg in configs:
        R, u, v, Y, P, Q = make_inputs(cfg["N"], cfg["M"], cfg["K"], cfg["scale"])
        got = jax.block_until_ready(pmf_loss(R, u, v, alpha, Y, P, Q, tm=cfg["tm"]))
        want = pmf_loss_ref(R, u, v, alpha, Y, P, Q)
        assert jnp.allclose(got, want, rtol=1e-3, atol=1e-3), (cfg, got, want)
    print("KERNEL_OK")
</pallas_src>

<mosaic_0001>
module attributes {stable_mosaic.version = 11 : i64} {
  func.func @_pmf_loss_kernel(%arg0: i32, %arg1: i32, %arg2: memref<16x512xf32, #tpu.memory_space<vmem>>, %arg3: memref<16x8xf32, #tpu.memory_space<vmem>>, %arg4: memref<16x8xf32, #tpu.memory_space<vmem>>, %arg5: memref<8x512xf32, #tpu.memory_space<vmem>>, %arg6: memref<1x16x128xf32, #tpu.memory_space<vmem>>, %arg7: memref<1x8x128xf32, #tpu.memory_space<vmem>>, %arg8: memref<16x8xf32, #tpu.memory_space<vmem>>) attributes {dimension_semantics = [#tpu.dimension_semantics<parallel>, #tpu.dimension_semantics<arbitrary>], iteration_bounds = array<i64: 2, 1>, scalar_prefetch = 0 : i64, scratch_operands = 1 : i64, tpu.core_type = #tpu.core_type<tc>, window_params = [{transform_indices = @transform_0, window_bounds = array<i64: 16, 512>}, {pipeline_mode = #tpu.pipeline_mode<synchronous>, transform_indices = @transform_1, window_bounds = array<i64: 16, 8>}, {pipeline_mode = #tpu.pipeline_mode<synchronous>, transform_indices = @transform_2, window_bounds = array<i64: 16, 8>}, {transform_indices = @transform_3, window_bounds = array<i64: 8, 512>}, {transform_indices = @transform_4, window_bounds = array<i64: 1, 16, 128>}, {transform_indices = @transform_5, window_bounds = array<i64: 1, 8, 128>}]} {
    %c0_i32 = arith.constant 0 : i32
    %0 = arith.cmpi eq, %arg1, %c0_i32 : i32
    %1 = arith.extui %0 : i1 to i32
    %c0_i32_0 = arith.constant 0 : i32
    %2 = arith.cmpi ne, %1, %c0_i32_0 : i32
    scf.if %2 {
      %c0_21 = arith.constant 0 : index
      %c0_22 = arith.constant 0 : index
      %50 = vector.load %arg4[%c0_21, %c0_22] : memref<16x8xf32, #tpu.memory_space<vmem>>, vector<16x8xf32>
      %c0_23 = arith.constant 0 : index
      %c0_24 = arith.constant 0 : index
      %51 = vector.load %arg3[%c0_23, %c0_24] : memref<16x8xf32, #tpu.memory_space<vmem>>, vector<16x8xf32>
      %52 = arith.mulf %50, %51 : vector<16x8xf32>
      %c0_25 = arith.constant 0 : index
      %c0_26 = arith.constant 0 : index
      %53 = vector.load %arg8[%c0_25, %c0_26] : memref<16x8xf32, #tpu.memory_space<vmem>>, vector<16x8xf32>
      tpu.vector_store %arg8[%c0_25, %c0_26], %52 {strides = array<i32>} : memref<16x8xf32, #tpu.memory_space<vmem>>, vector<16x8xf32>,
      %cst_27 = arith.constant 0.000000e+00 : f32
      %54 = vector.broadcast %cst_27 : f32 to vector<1x16x128xf32>
      %c0_28 = arith.constant 0 : index
      %c0_29 = arith.constant 0 : index
      %c0_30 = arith.constant 0 : index
      %55 = vector.load %arg6[%c0_28, %c0_29, %c0_30] : memref<1x16x128xf32, #tpu.memory_space<vmem>>, vector<1x16x128xf32>
      tpu.vector_store %arg6[%c0_28, %c0_29, %c0_30], %54 {strides = array<i32>} : memref<1x16x128xf32, #tpu.memory_space<vmem>>, vector<1x16x128xf32>,
      %cst_31 = arith.constant 0.000000e+00 : f32
      %56 = vector.broadcast %cst_31 : f32 to vector<1x8x128xf32>
      %c0_32 = arith.constant 0 : index
      %c0_33 = arith.constant 0 : index
      %c0_34 = arith.constant 0 : index
      %57 = vector.load %arg7[%c0_32, %c0_33, %c0_34] : memref<1x8x128xf32, #tpu.memory_space<vmem>>, vector<1x8x128xf32>
      tpu.vector_store %arg7[%c0_32, %c0_33, %c0_34], %56 {strides = array<i32>} : memref<1x8x128xf32, #tpu.memory_space<vmem>>, vector<1x8x128xf32>,
    } else {
    }
    %c0 = arith.constant 0 : index
    %c0_1 = arith.constant 0 : index
    %3 = vector.load %arg2[%c0, %c0_1] : memref<16x512xf32, #tpu.memory_space<vmem>>, vector<16x512xf32>
    %c0_2 = arith.constant 0 : index
    %c0_3 = arith.constant 0 : index
    %4 = vector.load %arg5[%c0_2, %c0_3] : memref<8x512xf32, #tpu.memory_space<vmem>>, vector<8x512xf32>
    %c1_i32 = arith.constant 1 : i32
    %5 = arith.muli %arg0, %c1_i32 : i32
    %6 = arith.addi %5, %arg1 : i32
    %7 = tpu.iota {dimensions = array<i32: 1>} : vector<1x512xi32>
    %c512_i32 = arith.constant 512 : i32
    %8 = arith.muli %6, %c512_i32 : i32
    %9 = vector.broadcast %8 : i32 to vector<1x512xi32>
    %10 = arith.addi %7, %9 : vector<1x512xi32>
    %c1024_i32 = arith.constant 1024 : i32
    %11 = vector.broadcast %c1024_i32 : i32 to vector<1x512xi32>
    %12 = arith.cmpi slt, %10, %11 : vector<1x512xi32>
    %c0_4 = arith.constant 0 : index
    %c0_5 = arith.constant 0 : index
    %13 = vector.load %arg8[%c0_4, %c0_5] : memref<16x8xf32, #tpu.memory_space<vmem>>, vector<16x8xf32>
    %cst = arith.constant dense<0.000000e+00> : vector<16x512xf32>
    %14 = tpu.matmul %13, %4, %cst {dimension_numbers = #tpu.dot_dimension_numbers<[1], [0], [0], [1], [0, 0, 1, 1], [], []>} : vector<16x8xf32>, vector<8x512xf32>, vector<16x512xf32> -> vector<16x512xf32>
    %cst_6 = arith.constant 0.000000e+00 : f32
    %15 = vector.broadcast %cst_6 : f32 to vector<16x512xf32>
    %16 = arith.cmpf one, %3, %15 : vector<16x512xf32>
    %17 = vector.broadcast %12 : vector<1x512xi1> to vector<16x512xi1>
    %18 = arith.andi %16, %17 : vector<16x512xi1>
    %19 = arith.subf %3, %14 : vector<16x512xf32>
    %cst_7 = arith.constant 0.000000e+00 : f32
    %20 = vector.broadcast %cst_7 : f32 to vector<16x512xf32>
    %21 = arith.select %18, %19, %20 : vector<16x512xi1>, vector<16x512xf32>
    %22 = arith.mulf %21, %21 : vector<16x512xf32>
    %23 = arith.mulf %4, %4 : vector<8x512xf32>
    %cst_8 = arith.constant 0.000000e+00 : f32
    %24 = vector.shape_cast %12 : vector<1x512xi1> to vector<1x512xi1>
    %25 = vector.broadcast %24 : vector<1x512xi1> to vector<8x512xi1>
    %26 = vector.broadcast %cst_8 : f32 to vector<8x512xf32>
    %27 = arith.select %25, %23, %26 : vector<8x512xi1>, vector<8x512xf32>
    %28 = vector.extract_strided_slice %22 {offsets = [0, 0], sizes = [16, 128], strides = [1, 1]} : vector<16x512xf32> to vector<16x128xf32>
    %29 = vector.extract_strided_slice %27 {offsets = [0, 0], sizes = [8, 128], strides = [1, 1]} : vector<8x512xf32> to vector<8x128xf32>
    %30 = vector.extract_strided_slice %22 {offsets = [0, 128], sizes = [16, 128], strides = [1, 1]} : vector<16x512xf32> to vector<16x128xf32>
    %31 = arith.addf %28, %30 : vector<16x128xf32>
    %32 = vector.extract_strided_slice %27 {offsets = [0, 128], sizes = [8, 128], strides = [1, 1]} : vector<8x512xf32> to vector<8x128xf32>
    %33 = arith.addf %29, %32 : vector<8x128xf32>
    %34 = vector.extract_strided_slice %22 {offsets = [0, 256], sizes = [16, 128], strides = [1, 1]} : vector<16x512xf32> to vector<16x128xf32>
    %35 = arith.addf %31, %34 : vector<16x128xf32>
    %36 = vector.extract_strided_slice %27 {offsets = [0, 256], sizes = [8, 128], strides = [1, 1]} : vector<8x512xf32> to vector<8x128xf32>
    %37 = arith.addf %33, %36 : vector<8x128xf32>
    %38 = vector.extract_strided_slice %22 {offsets = [0, 384], sizes = [16, 128], strides = [1, 1]} : vector<16x512xf32> to vector<16x128xf32>
    %39 = arith.addf %35, %38 : vector<16x128xf32>
    %40 = vector.extract_strided_slice %27 {offsets = [0, 384], sizes = [8, 128], strides = [1, 1]} : vector<8x512xf32> to vector<8x128xf32>
    %41 = arith.addf %37, %40 : vector<8x128xf32>
    %c0_9 = arith.constant 0 : index
    %c0_10 = arith.constant 0 : index
    %c0_11 = arith.constant 0 : index
    %42 = vector.load %arg6[%c0_9, %c0_10, %c0_11] : memref<1x16x128xf32, #tpu.memory_space<vmem>>, vector<1x16x128xf32>
    %43 = vector.shape_cast %39 : vector<16x128xf32> to vector<1x16x128xf32>
    %44 = arith.addf %42, %43 : vector<1x16x128xf32>
    %c0_12 = arith.constant 0 : index
    %c0_13 = arith.constant 0 : index
    %c0_14 = arith.constant 0 : index
    %45 = vector.load %arg6[%c0_12, %c0_13, %c0_14] : memref<1x16x128xf32, #tpu.memory_space<vmem>>, vector<1x16x128xf32>
    tpu.vector_store %arg6[%c0_12, %c0_13, %c0_14], %44 {strides = array<i32>} : memref<1x16x128xf32, #tpu.memory_space<vmem>>, vector<1x16x128xf32>,
    %c0_15 = arith.constant 0 : index
    %c0_16 = arith.constant 0 : index
    %c0_17 = arith.constant 0 : index
    %46 = vector.load %arg7[%c0_15, %c0_16, %c0_17] : memref<1x8x128xf32, #tpu.memory_space<vmem>>, vector<1x8x128xf32>
    %47 = vector.shape_cast %41 : vector<8x128xf32> to vector<1x8x128xf32>
    %48 = arith.addf %46, %47 : vector<1x8x128xf32>
    %c0_18 = arith.constant 0 : index
    %c0_19 = arith.constant 0 : index
    %c0_20 = arith.constant 0 : index
    %49 = vector.load %arg7[%c0_18, %c0_19, %c0_20] : memref<1x8x128xf32, #tpu.memory_space<vmem>>, vector<1x8x128xf32>
    tpu.vector_store %arg7[%c0_18, %c0_19, %c0_20], %48 {strides = array<i32>} : memref<1x8x128xf32, #tpu.memory_space<vmem>>, vector<1x8x128xf32>,
    return
  }
  func.func @transform_0(%arg0: i32, %arg1: i32) -> (i32, i32) {
    %c1_i32 = arith.constant 1 : i32
    %0 = arith.muli %arg0, %c1_i32 : i32
    %1 = arith.addi %0, %arg1 : i32
    %c1_i32_0 = arith.constant 1 : i32
    %2 = arith.minsi %1, %c1_i32_0 : i32
    %c0_i32 = arith.constant 0 : i32
    %c0_i32_1 = arith.constant 0 : i32
    return %c0_i32, %2 : i32, i32
  }
  func.func @transform_1(%arg0: i32, %arg1: i32) -> (i32, i32) {
    %c0_i32 = arith.constant 0 : i32
    %c0_i32_0 = arith.constant 0 : i32
    %c0_i32_1 = arith.constant 0 : i32
    return %c0_i32, %c0_i32_0 : i32, i32
  }
  func.func @transform_2(%arg0: i32, %arg1: i32) -> (i32, i32) {
    %c0_i32 = arith.constant 0 : i32
    %c0_i32_0 = arith.constant 0 : i32
    %c0_i32_1 = arith.constant 0 : i32
    return %c0_i32, %c0_i32_0 : i32, i32
  }
  func.func @transform_3(%arg0: i32, %arg1: i32) -> (i32, i32) {
    %c1_i32 = arith.constant 1 : i32
    %0 = arith.muli %arg0, %c1_i32 : i32
    %1 = arith.addi %0, %arg1 : i32
    %c1_i32_0 = arith.constant 1 : i32
    %2 = arith.minsi %1, %c1_i32_0 : i32
    %c0_i32 = arith.constant 0 : i32
    %c0_i32_1 = arith.constant 0 : i32
    return %c0_i32, %2 : i32, i32
  }
  func.func @transform_4(%arg0: i32, %arg1: i32) -> (i32, i32, i32) {
    %c0_i32 = arith.constant 0 : i32
    %c0_i32_0 = arith.constant 0 : i32
    %c0_i32_1 = arith.constant 0 : i32
    return %arg0, %c0_i32, %c0_i32_0 : i32, i32, i32
  }
  func.func @transform_5(%arg0: i32, %arg1: i32) -> (i32, i32, i32) {
    %c0_i32 = arith.constant 0 : i32
    %c0_i32_0 = arith.constant 0 : i32
    %c0_i32_1 = arith.constant 0 : i32
    return %arg0, %c0_i32, %c0_i32_0 : i32, i32, i32
  }
}

</mosaic_0001>

<llo_original>
// kernel: tpu_custom_call.1
$region0: #{tpu_custom_call.1}
  #allocation0 [shape = 'u32[]', space=smem, size = 0x4, offset = 0x4, fixed_abs, tag = 'smem constant byte address 0x4 - core index']
  #allocation1 [shape = 'u32[144,128]{1,0:T(1,128)}', space=vmem, size = 0x12000, scoped, tag = 'internal scratch']
  #allocation2 [shape = 'f32[16,8]{1,0:T(8,128)}', space=vmem, size = 0x2000, scoped, tag = 'scratch operand']
  %s0 = inlined_call_operand.hbm [shape: f32[16,1024], index: 0, kind: input, shape index: {}]
  %s1 = inlined_call_operand.vmem [shape: f32[16,8], index: 1, kind: input, shape index: {}]
  %s2 = inlined_call_operand.vmem [shape: f32[16,8], index: 2, kind: input, shape index: {}]
  %s3 = inlined_call_operand.hbm [shape: f32[8,1024], index: 3, kind: input, shape index: {}]
  %s4 = inlined_call_operand.hbm [shape: f32[2,16,128], index: 4, kind: output, shape index: {0}]
  %s5 = inlined_call_operand.hbm [shape: f32[2,8,128], index: 5, kind: output, shape index: {1}]
  %6 = xla_tuple %s4, %s5
  %s7 = sld [smem:[#allocation0]]
  $region69: #{tpu_custom_call.1} parent=0
    _
  %s9 = ssub.s32 1, %s7
  %s10 = scalar_select 0, %s9, %s7
  $region1: #{tpu_custom_call.1} parent=0
    #allocation3 [shape = 'u8[65536]{0}', space=vmem, size = 0x10000, scoped, tag = 'input window, operand 0']
    #allocation4 [shape = 's32[2]{0}', space=sflag, size = 0x8, scoped, tag = 'scoped memory for tpu_custom_call.1']
    #allocation5 [shape = 's32[2]{0}', space=sflag, size = 0x8, scoped, tag = 'scoped memory for tpu_custom_call.1']
    #allocation6 [shape = 'u8[32768]{0}', space=vmem, size = 0x8000, scoped, tag = 'input window, operand 3']
    #allocation7 [shape = 's32[2]{0}', space=sflag, size = 0x8, scoped, tag = 'scoped memory for tpu_custom_call.1']
    #allocation8 [shape = 'u8[16384]{0}', space=vmem, size = 0x4000, scoped, tag = 'output window, operand 0']
    #allocation9 [shape = 'u8[8192]{0}', space=vmem, size = 0x2000, scoped, tag = 'output window, operand 1']
    #allocation10 [shape = 's32[2]{0}', space=sflag, size = 0x8, scoped, tag = 'scoped memory for tpu_custom_call.1']
    %11 = vsyncpa [#allocation4], 0
    %s12 = scalar_lea.sflag [#allocation4], 1
    %13 = vsyncpa %s12, 0
    %14 = vsyncpa [#allocation7], 0
    %s15 = scalar_lea.sflag [#allocation7], 1
    %16 = vsyncpa %s15, 0
    %17 = vsyncpa [#allocation5], 0
    %s18 = scalar_lea.sflag [#allocation5], 1
    %19 = vsyncpa %s18, 0
    %20 = vsyncpa [#allocation10], 0
    %s21 = scalar_lea.sflag [#allocation10], 1
    %22 = vsyncpa %s21, 0
    loop: start=0, step=1, limit=4
    $region2: #{tpu_custom_call.1} parent=1 // loop_pre_header
      _
    $region3: #{tpu_custom_call.1} parent=1 // loop_header
      %s24 = sphi 0, %s28
      %p25 = scmp.ge.s32.totalorder %s24, 4
      %s31 = sphi 0, %s43
      %s32 = sphi 0, %s39
      %s33 = sphi 0, %s31
      %s34 = sphi 0, %s32
      %s35 = sphi 0, %s33
      %s36 = sphi 0, %s34
      %s52 = sphi 0, %s54
      %s55 = sphi 0, %s52
      %s56 = sphi 0, %s55
      %s72 = sphi 0, %s56
      %s76 = sphi 0, %s76
      %s78 = sphi 0, %s76
      %s79 = sphi 0, %s78
      %s93 = sphi 0, %s79
      %s97 = sphi 0, %s97
      %s99 = sphi 0, %s97
      %s100 = sphi 0, %s99
      %s114 = sphi 0, %s100
      %s126 = sphi 0, %s128
      %s129 = sphi 0, %s126
      %s130 = sphi 0, %s129
      %s146 = sphi 0, %s130
      %s152 = sphi 0, %s154
      %s155 = sphi 0, %s152
      %s156 = sphi 0, %s155
      %s172 = sphi 0, %s156
      %s178 = sphi 0, %s180
      %s181 = sphi 0, %s178
      %s182 = sphi 0, %s181
      %s198 = sphi 0, %s182
    $region4: #{tpu_custom_call.1} parent=1 // loop_header_branch
      %27 = sbr.rel (%p25) target = $region8
    $region5: #{tpu_custom_call.1} parent=1 // loop_body
      %s29 = ssub.s32 %s24, 1
      %s30 = ssub.s32 %s24, 2
      %s37 = sadd.s32 1, %s32
      %p38 = scmp.ge.s32.totalorder %s37, 1
      %s39 = scalar_select %p38, 0, %s37
      %s40 = sadd.s32 1, %s31
      %s41 = scalar_select %p38, %s40, %s31
      %p42 = scmp.ge.s32.totalorder %s41, 2
      %s43 = scalar_select %p42, 0, %s41
      %s44 = sadd.s32 %s31, %s32
      %p45 = scmp.lt.s32.totalorder %s44, 1
      %s46 = scalar_select %p45, %s44, 1
      %s47 = sadd.s32 %s43, %s39
      %p48 = scmp.lt.s32.totalorder %s47, 1
      %s49 = scalar_select %p48, %s47, 1
      %s50 = ssub.s32 %s46, %s49
      %p51 = scmp.eq.s32.totalorder %s50, 0
      %s53 = sadd.s32 %s52, 1
      %s54 = scalar_select %p51, %s52, %s53
      %p57 = pneg %p51
      %p58 = scmp.eq.s32.totalorder %s24, 1
      %p59 = por %p57, %p58
      %p60 = scmp.ne.s32.totalorder %s52, %s55
      %p61 = scmp.eq.s32.totalorder %s24, 0
      %p62 = por %p60, %p61
      %p63 = scmp.ne.s32.totalorder %s52, %s55
      %p64 = scmp.eq.s32.totalorder %s29, 1
      %p65 = por %p63, %p64
      %p66 = scmp.ne.s32.totalorder %s55, %s56
      %p67 = scmp.eq.s32.totalorder %s29, 0
      %p68 = por %p66, %p67
      %p69 = scmp.ne.s32.totalorder %s55, %s56
      %p70 = scmp.eq.s32.totalorder %s30, 1
      %p71 = por %p69, %p70
      %p73 = scmp.ne.s32.totalorder %s56, %s72
      %p74 = scmp.eq.s32.totalorder %s30, 0
      %p75 = por %p73, %p74
      %s77 = sadd.s32 %s76, 1
      %p80 = scmp.eq.s32.totalorder %s24, 1
      %p81 = scmp.ne.s32.totalorder %s76, %s78
      %p82 = scmp.eq.s32.totalorder %s24, 0
      %p83 = por %p81, %p82
      %p84 = scmp.ne.s32.totalorder %s76, %s78
      %p85 = scmp.eq.s32.totalorder %s29, 1
      %p86 = por %p84, %p85
      %p87 = scmp.ne.s32.totalorder %s78, %s79
      %p88 = scmp.eq.s32.totalorder %s29, 0
      %p89 = por %p87, %p88
      %p90 = scmp.ne.s32.totalorder %s78, %s79
      %p91 = scmp.eq.s32.totalorder %s30, 1
      %p92 = por %p90, %p91
      %p94 = scmp.ne.s32.totalorder %s79, %s93
      %p95 = scmp.eq.s32.totalorder %s30, 0
      %p96 = por %p94, %p95
      %s98 = sadd.s32 %s97, 1
      %p101 = scmp.eq.s32.totalorder %s24, 1
      %p102 = scmp.ne.s32.totalorder %s97, %s99
      %p103 = scmp.eq.s32.totalorder %s24, 0
      %p104 = por %p102, %p103
      %p105 = scmp.ne.s32.totalorder %s97, %s99
      %p106 = scmp.eq.s32.totalorder %s29, 1
      %p107 = por %p105, %p106
      %p108 = scmp.ne.s32.totalorder %s99, %s100
      %p109 = scmp.eq.s32.totalorder %s29, 0
      %p110 = por %p108, %p109
      %p111 = scmp.ne.s32.totalorder %s99, %s100
      %p112 = scmp.eq.s32.totalorder %s30, 1
      %p113 = por %p111, %p112
      %p115 = scmp.ne.s32.totalorder %s100, %s114
      %p116 = scmp.eq.s32.totalorder %s30, 0
      %p117 = por %p115, %p116
      %s118 = sadd.s32 %s31, %s32
      %p119 = scmp.lt.s32.totalorder %s118, 1
      %s120 = scalar_select %p119, %s118, 1
      %s121 = sadd.s32 %s43, %s39
      %p122 = scmp.lt.s32.totalorder %s121, 1
      %s123 = scalar_select %p122, %s121, 1
      %s124 = ssub.s32 %s120, %s123
      %p125 = scmp.eq.s32.totalorder %s124, 0
      %s127 = sadd.s32 %s126, 1
      %s128 = scalar_select %p125, %s126, %s127
      %p131 = pneg %p125
      %p132 = scmp.eq.s32.totalorder %s24, 1
      %p133 = por %p131, %p132
      %p134 = scmp.ne.s32.totalorder %s126, %s129
      %p135 = scmp.eq.s32.totalorder %s24, 0
      %p136 = por %p134, %p135
      %p137 = scmp.ne.s32.totalorder %s126, %s129
      %p138 = scmp.eq.s32.totalorder %s29, 1
      %p139 = por %p137, %p138
      %p140 = scmp.ne.s32.totalorder %s129, %s130
      %p141 = scmp.eq.s32.totalorder %s29, 0
      %p142 = por %p140, %p141
      %p143 = scmp.ne.s32.totalorder %s129, %s130
      %p144 = scmp.eq.s32.totalorder %s30, 1
      %p145 = por %p143, %p144
      %p147 = scmp.ne.s32.totalorder %s130, %s146
      %p148 = scmp.eq.s32.totalorder %s30, 0
      %p149 = por %p147, %p148
      %s150 = ssub.s32 %s31, %s43
      %p151 = scmp.eq.s32.totalorder %s150, 0
      %s153 = sadd.s32 %s152, 1
      %s154 = scalar_select %p151, %s152, %s153
      %p157 = pneg %p151
      %p158 = scmp.eq.s32.totalorder %s24, 1
      %p159 = por %p157, %p158
      %p160 = scmp.ne.s32.totalorder %s152, %s155
      %p161 = scmp.eq.s32.totalorder %s24, 0
      %p162 = por %p160, %p161
      %p163 = scmp.ne.s32.totalorder %s152, %s155
      %p164 = scmp.eq.s32.totalorder %s29, 1
      %p165 = por %p163, %p164
      %p166 = scmp.ne.s32.totalorder %s155, %s156
      %p167 = scmp.eq.s32.totalorder %s29, 0
      %p168 = por %p166, %p167
      %p169 = scmp.ne.s32.totalorder %s155, %s156
      %p170 = scmp.eq.s32.totalorder %s30, 1
      %p171 = por %p169, %p170
      %p173 = scmp.ne.s32.totalorder %s156, %s172
      %p174 = scmp.eq.s32.totalorder %s30, 0
      %p175 = por %p173, %p174
      %s176 = ssub.s32 %s31, %s43
      %p177 = scmp.eq.s32.totalorder %s176, 0
      %s179 = sadd.s32 %s178, 1
      %s180 = scalar_select %p177, %s178, %s179
      %p183 = pneg %p177
      %p184 = scmp.eq.s32.totalorder %s24, 1
      %p185 = por %p183, %p184
      %p186 = scmp.ne.s32.totalorder %s178, %s181
      %p187 = scmp.eq.s32.totalorder %s24, 0
      %p188 = por %p186, %p187
      %p189 = scmp.ne.s32.totalorder %s178, %s181
      %p190 = scmp.eq.s32.totalorder %s29, 1
      %p191 = por %p189, %p190
      %p192 = scmp.ne.s32.totalorder %s181, %s182
      %p193 = scmp.eq.s32.totalorder %s29, 0
      %p194 = por %p192, %p193
      %p195 = scmp.ne.s32.totalorder %s181, %s182
      %p196 = scmp.eq.s32.totalorder %s30, 1
      %p197 = por %p195, %p196
      %p199 = scmp.ne.s32.totalorder %s182, %s198
      %p200 = scmp.eq.s32.totalorder %s30, 0
      %p201 = por %p199, %p200
      %p202 = scmp.le.s32.totalorder 1, %s24
      %p203 = scmp.lt.s32.totalorder %s24, 3
      %p204 = pnand %p202, %p203
      %p205 = pneg %p204
      // Predicated region
      $region9: #{tpu_custom_call.1} parent=5 // pred_check
        _
      $region10: #{tpu_custom_call.1} parent=5 // pred_check_branch
        %207 = sbr.rel (%p204) target = $region12
      $region11: #{tpu_custom_call.1} parent=5 // pred_region
        %s208 = ssub.s32 %s24, 1
        // Predicated region
        $region13: #{tpu_custom_call.1} parent=11 // pred_check
          %p209 = pneg %p89
        $region14: #{tpu_custom_call.1} parent=11 // pred_check_branch
          %211 = sbr.rel (%p209) target = $region16
        $region15: #{tpu_custom_call.1} parent=11 // pred_region
          _
        $region16: #{tpu_custom_call.1} parent=11 // pred_fallthru
          _
        // Predicated region
        $region17: #{tpu_custom_call.1} parent=11 // pred_check
          %p212 = pneg %p110
        $region18: #{tpu_custom_call.1} parent=11 // pred_check_branch
          %214 = sbr.rel (%p212) target = $region20
        $region19: #{tpu_custom_call.1} parent=11 // pred_region
          _
        $region20: #{tpu_custom_call.1} parent=11 // pred_fallthru
          _
      $region12: #{tpu_custom_call.1} parent=5 // pred_fallthru
        _
      %p215 = scmp.lt.s32.totalorder %s24, 2
      // Predicated region
      $region21: #{tpu_custom_call.1} parent=5 // pred_check
        %p216 = pneg %p215
      $region22: #{tpu_custom_call.1} parent=5 // pred_check_branch
        %218 = sbr.rel (%p216) target = $region24
      $region23: #{tpu_custom_call.1} parent=5 // pred_region
        // Predicated region
        $region25: #{tpu_custom_call.1} parent=23 // pred_check
          %p219 = pneg %p62
        $region26: #{tpu_custom_call.1} parent=23 // pred_check_branch
          %221 = sbr.rel (%p219) target = $region28
        $region27: #{tpu_custom_call.1} parent=23 // pred_region
          %s222 = sand.u32 %s52, 1
          %s223 = scalar_lea.sflag [#allocation4], %s222
          %s224 = sand.u32 %s52, 1
          %s225 = smul.addr %s224, 64
          %s226 = scalar_lea.vmem [#allocation3], %s225
          %s227 = sadd.s32 %s31, %s32
          %p228 = scmp.lt.s32.totalorder %s227, 1
          %s229 = scalar_select %p228, %s227, 1
          %s230 = smul.u32 4, %s229
          %s232 = ssub.s32 1024, 1024
          %233 = vsyncadd %s223, %s232
          %s234 = smul.addr %s230, 128
          %s235 = scalar_lea.hbm %s0, %s234
          %s236 = sshll.u32 %s226, 4
          %s237 = int_to_ptr.vmem [resolvable:$true] %s236
          %242 = dma.hbm_to_vmem [thread:$0]  %s235, 1024, %s237, %s223, 1024, 512, 32
        $region28: #{tpu_custom_call.1} parent=23 // pred_fallthru
          _
        // Predicated region
        $region29: #{tpu_custom_call.1} parent=23 // pred_check
          %p243 = pneg %p136
        $region30: #{tpu_custom_call.1} parent=23 // pred_check_branch
          %245 = sbr.rel (%p243) target = $region32
        $region31: #{tpu_custom_call.1} parent=23 // pred_region
          %s246 = sand.u32 %s126, 1
          %s247 = scalar_lea.sflag [#allocation7], %s246
          %s248 = sand.u32 %s126, 1
          %s249 = smul.addr %s248, 32
          %s250 = scalar_lea.vmem [#allocation6], %s249
          %s251 = sadd.s32 %s31, %s32
          %p252 = scmp.lt.s32.totalorder %s251, 1
          %s253 = scalar_select %p252, %s251, 1
          %s254 = smul.u32 4, %s253
          %s256 = ssub.s32 512, 512
          %257 = vsyncadd %s247, %s256
          %s258 = smul.addr %s254, 128
          %s259 = scalar_lea.hbm %s3, %s258
          %s261 = sshll.u32 %s250, 4
          %s262 = int_to_ptr.vmem [resolvable:$true] %s261
          %264 = dma.hbm_to_vmem [thread:$0]  %s259, 512, %s262, %s247
        $region32: #{tpu_custom_call.1} parent=23 // pred_fallthru
          _
      $region24: #{tpu_custom_call.1} parent=5 // pred_fallthru
        _
      %p265 = scmp.le.s32.totalorder 1, %s24
      %p266 = scmp.lt.s32.totalorder %s24, 3
      %p267 = pnand %p265, %p266
      %p268 = pneg %p267
      // Predicated region
      $region33: #{tpu_custom_call.1} parent=5 // pred_check
        _
      $region34: #{tpu_custom_call.1} parent=5 // pred_check_branch
        %270 = sbr.rel (%p267) target = $region36
      $region35: #{tpu_custom_call.1} parent=5 // pred_region
        %s271 = ssub.s32 %s24, 1
        %s272 = sand.u32 %s55, 1
        %s273 = scalar_lea.sflag [#allocation4], %s272
        %s274 = sand.u32 %s55, 1
        %s275 = smul.addr %s274, 64
        %s276 = scalar_lea.vmem [#allocation3], %s275
        // Predicated region
        $region37: #{tpu_custom_call.1} parent=35 // pred_check
          %p277 = pneg %p68
        $region38: #{tpu_custom_call.1} parent=35 // pred_check_branch
          %279 = sbr.rel (%p277) target = $region40
        $region39: #{tpu_custom_call.1} parent=35 // pred_region
          %280 = dma.done %s273, 1024
        $region40: #{tpu_custom_call.1} parent=35 // pred_fallthru
          _
        %s281 = sand.u32 %s129, 1
        %s282 = scalar_lea.sflag [#allocation7], %s281
        %s283 = sand.u32 %s129, 1
        %s284 = smul.addr %s283, 32
        %s285 = scalar_lea.vmem [#allocation6], %s284
        // Predicated region
        $region41: #{tpu_custom_call.1} parent=35 // pred_check
          %p286 = pneg %p142
        $region42: #{tpu_custom_call.1} parent=35 // pred_check_branch
          %288 = sbr.rel (%p286) target = $region44
        $region43: #{tpu_custom_call.1} parent=35 // pred_region
          %289 = dma.done %s282, 512
        $region44: #{tpu_custom_call.1} parent=35 // pred_fallthru
          _
        %s290 = sand.u32 %s55, 1
        %s291 = scalar_lea.sflag [#allocation4], %s290
        %s292 = sand.u32 %s55, 1
        %s293 = smul.addr %s292, 64
        %s294 = scalar_lea.vmem [#allocation3], %s293
        %p295 = pneg %p68
        %p296 = pneg %p65
        %p297 = pneg %p89
        %p298 = pneg %p86
        %p299 = pneg %p110
        %p300 = pneg %p107
        %s301 = sand.u32 %s129, 1
        %s302 = scalar_lea.sflag [#allocation7], %s301
        %s303 = sand.u32 %s129, 1
        %s304 = smul.addr %s303, 32
        %s305 = scalar_lea.vmem [#allocation6], %s304
        %p306 = pneg %p142
        %p307 = pneg %p139
        %p308 = pneg %p168
        %p309 = pneg %p165
        %s310 = sand.u32 %s155, 1
        %s311 = scalar_lea.sflag [#allocation5], %s310
        %s312 = sand.u32 %s155, 1
        %s313 = smul.addr %s312, 16
        %s314 = scalar_lea.vmem [#allocation8], %s313
        %p315 = pneg %p194
        %p316 = pneg %p191
        %s317 = sand.u32 %s181, 1
        %s318 = scalar_lea.sflag [#allocation10], %s317
        %s319 = sand.u32 %s181, 1
        %s320 = smul.addr %s319, 8
        %s321 = scalar_lea.vmem [#allocation9], %s320
        %s322 = sadd.s32 %s33, %s34
        %p323 = scmp.lt.s32.totalorder %s322, 1
        %s324 = scalar_select %p323, %s322, 1
        %s325 = smul.u32 4, %s324
        %s326 = sadd.s32 %s33, %s34
        %p327 = scmp.lt.s32.totalorder %s326, 1
        %s328 = scalar_select %p327, %s326, 1
        %s329 = smul.u32 4, %s328
        %p330 = scmp.eq.s32.totalorder %s34, 0
        // Predicated region
        $region45: #{tpu_custom_call.1} parent=35 // pred_check
          %p331 = pneg %p330
        $region46: #{tpu_custom_call.1} parent=35 // pred_check_branch
          %333 = sbr.rel (%p331) target = $region48
        $region47: #{tpu_custom_call.1} parent=35 // pred_region
          %v334 = vld [vmem:[%s2] sm:$0xff]
          %v335 = vld [vmem:[%s2 + $0x8] sm:$0xff]
          %v336 = vld [vmem:[%s1] sm:$0xff]
          %v337 = vld [vmem:[%s1 + $0x8] sm:$0xff]
          %v338 = vmul.f32 %v334, %v336
          %v339 = vmul.f32 %v335, %v337
          %vm340 = vcmask 64512
          %341 = vst.msk [vmem:[#allocation2] sm:$0xff] %vm340, %v338
          %342 = vst.msk [vmem:[#allocation2 + $0x8] sm:$0xff] %vm340, %v339
          %343 = vst [vmem:[%s314] sm:$0xff] 0.0
          %344 = vst [vmem:[%s314 + $0x8] sm:$0xff] 0.0
          %345 = vst [vmem:[%s321] sm:$0xff] 0.0
        $region48: #{tpu_custom_call.1} parent=35 // pred_fallthru
          _
        %v346 = vld [vmem:[%s276] sm:$0xff]
        %v347 = vld [vmem:[%s276 + $0x8] sm:$0xff]
        %v348 = vld [vmem:[%s276 + $0x10] sm:$0xff]
        %v349 = vld [vmem:[%s276 + $0x18] sm:$0xff]
        %v350 = vld [vmem:[%s276 + $0x20] sm:$0xff]
        %v351 = vld [vmem:[%s276 + $0x28] sm:$0xff]
        %v352 = vld [vmem:[%s276 + $0x30] sm:$0xff]
        %v353 = vld [vmem:[%s276 + $0x38] sm:$0xff]
        %v354 = vld [vmem:[%s285] sm:$0xff]
        %v355 = vld [vmem:[%s285 + $0x8] sm:$0xff]
        %v356 = vld [vmem:[%s285 + $0x10] sm:$0xff]
        %v357 = vld [vmem:[%s285 + $0x18] sm:$0xff]
        %s358 = sadd.s32 %s33, %s34
        %v359 = vlaneseq
        %v360 = vand.u32 %v359, 127
        %v361 = vadd.s32 %v360, 128
        %v362 = vadd.s32 %v360, 256
        %v363 = vadd.s32 %v360, 384
        %s364 = smul.u32 %s358, 512
        %v365 = vstv %s364
        %v366 = vadd.s32 %v360, %v365
        %v367 = vadd.s32 %v361, %v365
        %v368 = vadd.s32 %v362, %v365
        %v369 = vadd.s32 %v363, %v365
        %vm370 = vcmp.lt.s32.totalorder %v366, 1024
        %vm371 = vcmp.lt.s32.totalorder %v367, 1024
        %vm372 = vcmp.lt.s32.totalorder %v368, 1024
        %vm373 = vcmp.lt.s32.totalorder %v369, 1024
        %v374 = vld [vmem:[#allocation2] sm:$0xff]
        %v375 = vld [vmem:[#allocation2 + $0x8] sm:$0xff]
        %vm376 = vcmask 64512
        %v378 = vsel %vm376, %v374, 0
        %v381 = vsel %vm376, %v375, 0
        %383 = vmatprep.subr.mxu0 0.0
        %384 = vmatpush1.msra.mxu0 0.0
        %385 = vmatprep.subr.mxu0 0.0
        %386 = vmatpush1.msra.mxu0 0.0
        %387 = vmatprep.subr.mxu0 0.0
        %388 = vmatpush1.msra.mxu0 0.0
        %389 = vmatprep.subr.mxu0 0.0
        %390 = vmatpush1.msra.mxu0 0.0
        %391 = vmatprep.subr.mxu0 0.0
        %392 = vmatpush1.msra.mxu0 0.0
        %393 = vmatprep.subr.mxu0 0.0
        %394 = vmatpush1.msra.mxu0 0.0
        %395 = vmatprep.subr.mxu0 0.0
        %396 = vmatpush1.msra.mxu0 0.0
        %397 = vmatprep.subr.mxu0 0.0
        %398 = vmatpush1.msra.mxu0 0.0
        %399 = vmatprep.subr.mxu0 0.0
        %400 = vmatpush1.msra.mxu0 0.0
        %401 = vmatprep.subr.mxu0 0.0
        %402 = vmatpush1.msra.mxu0 0.0
        %403 = vmatprep.subr.mxu0 0.0
        %404 = vmatpush1.msra.mxu0 0.0
        %405 = vmatprep.subr.mxu0 0.0
        %406 = vmatpush1.msra.mxu0 0.0
        %407 = vmatprep.subr.mxu0 0.0
        %408 = vmatpush1.msra.mxu0 0.0
        %409 = vmatprep.subr.mxu0 0.0
        %410 = vmatpush1.msra.mxu0 0.0
        %411 = vmatprep.subr.mxu0 0.0
        %412 = vmatpush1.msra.mxu0 0.0
        %413 = vmatprep.subr.mxu0 %v355
        %414 = vmatpush1.msra.mxu0 %v354
        %415 = vmatprep.subr.mxu0 0.0
        %416 = vmatpush2.msra.mxu0 0.0
        %417 = vmatprep.subr.mxu0 0.0
        %418 = vmatpush2.msra.mxu0 0.0
        %419 = vmatprep.subr.mxu0 0.0
        %420 = vmatpush2.msra.mxu0 0.0
        %421 = vmatprep.subr.mxu0 0.0
        %422 = vmatpush2.msra.mxu0 0.0
        %423 = vmatprep.subr.mxu0 0.0
        %424 = vmatpush2.msra.mxu0 0.0
        %425 = vmatprep.subr.mxu0 0.0
        %426 = vmatpush2.msra.mxu0 0.0
        %427 = vmatprep.subr.mxu0 0.0
        %428 = vmatpush2.msra.mxu0 0.0
        %429 = vmatprep.subr.mxu0 0.0
        %430 = vmatpush2.msra.mxu0 0.0
        %431 = vmatprep.subr.mxu0 0.0
        %432 = vmatpush2.msra.mxu0 0.0
        %433 = vmatprep.subr.mxu0 0.0
        %434 = vmatpush2.msra.mxu0 0.0
        %435 = vmatprep.subr.mxu0 0.0
        %436 = vmatpush2.msra.mxu0 0.0
        %437 = vmatprep.subr.mxu0 0.0
        %438 = vmatpush2.msra.mxu0 0.0
        %439 = vmatprep.subr.mxu0 0.0
        %440 = vmatpush2.msra.mxu0 0.0
        %441 = vmatprep.subr.mxu0 0.0
        %442 = vmatpush2.msra.mxu0 0.0
        %443 = vmatprep.subr.mxu0 0.0
        %444 = vmatpush2.msra.mxu0 0.0
        %445 = vmatprep.subr.mxu0 0.0
        %446 = vmatpush2.msra.mxu0 0.0
        %447 = vmatprep.mubr.f32.mxu0 0.0
        %448 = vmatmul.mubr.f32.gmra.mxu0 %v378
        %v449 = vpop.f32.mrf.mxu0
        %v450 = vadd.f32 0.0, %v449
        %v451 = vpop.f32.mrf.mxu0
        %v452 = vadd.f32 0.0, %v451
        %453 = vmatprep.mubr.f32.mxu0 0.0
        %454 = vmatmul.mubr.f32.gmra.mxu0 %v381
        %v455 = vpop.f32.mrf.mxu0
        %v456 = vadd.f32 0.0, %v455
        %v457 = vpop.f32.mrf.mxu0
        %v458 = vadd.f32 0.0, %v457
        %459 = vdwg.mxu0
        %460 = vmatprep.subr.mxu0 0.0
        %461 = vmatpush1.msra.mxu0 0.0
        %462 = vmatprep.subr.mxu0 0.0
        %463 = vmatpush1.msra.mxu0 0.0
        %464 = vmatprep.subr.mxu0 0.0
        %465 = vmatpush1.msra.mxu0 0.0
        %466 = vmatprep.subr.mxu0 0.0
        %467 = vmatpush1.msra.mxu0 0.0
        %468 = vmatprep.subr.mxu0 0.0
        %469 = vmatpush1.msra.mxu0 0.0
        %470 = vmatprep.subr.mxu0 0.0
        %471 = vmatpush1.msra.mxu0 0.0
        %472 = vmatprep.subr.mxu0 0.0
        %473 = vmatpush1.msra.mxu0 0.0
        %474 = vmatprep.subr.mxu0 0.0
        %475 = vmatpush1.msra.mxu0 0.0
        %476 = vmatprep.subr.mxu0 0.0
        %477 = vmatpush1.msra.mxu0 0.0
        %478 = vmatprep.subr.mxu0 0.0
        %479 = vmatpush1.msra.mxu0 0.0
        %480 = vmatprep.subr.mxu0 0.0
        %481 = vmatpush1.msra.mxu0 0.0
        %482 = vmatprep.subr.mxu0 0.0
        %483 = vmatpush1.msra.mxu0 0.0
        %484 = vmatprep.subr.mxu0 0.0
        %485 = vmatpush1.msra.mxu0 0.0
        %486 = vmatprep.subr.mxu0 0.0
        %487 = vmatpush1.msra.mxu0 0.0
        %488 = vmatprep.subr.mxu0 0.0
        %489 = vmatpush1.msra.mxu0 0.0
        %490 = vmatprep.subr.mxu0 %v357
        %491 = vmatpush1.msra.mxu0 %v356
        %492 = vmatprep.subr.mxu0 0.0
        %493 = vmatpush2.msra.mxu0 0.0
        %494 = vmatprep.subr.mxu0 0.0
        %495 = vmatpush2.msra.mxu0 0.0
        %496 = vmatprep.subr.mxu0 0.0
        %497 = vmatpush2.msra.mxu0 0.0
        %498 = vmatprep.subr.mxu0 0.0
        %499 = vmatpush2.msra.mxu0 0.0
        %500 = vmatprep.subr.mxu0 0.0
        %501 = vmatpush2.msra.mxu0 0.0
        %502 = vmatprep.subr.mxu0 0.0
        %503 = vmatpush2.msra.mxu0 0.0
        %504 = vmatprep.subr.mxu0 0.0
        %505 = vmatpush2.msra.mxu0 0.0
        %506 = vmatprep.subr.mxu0 0.0
        %507 = vmatpush2.msra.mxu0 0.0
        %508 = vmatprep.subr.mxu0 0.0
        %509 = vmatpush2.msra.mxu0 0.0
        %510 = vmatprep.subr.mxu0 0.0
        %511 = vmatpush2.msra.mxu0 0.0
        %512 = vmatprep.subr.mxu0 0.0
        %513 = vmatpush2.msra.mxu0 0.0
        %514 = vmatprep.subr.mxu0 0.0
        %515 = vmatpush2.msra.mxu0 0.0
        %516 = vmatprep.subr.mxu0 0.0
        %517 = vmatpush2.msra.mxu0 0.0
        %518 = vmatprep.subr.mxu0 0.0
        %519 = vmatpush2.msra.mxu0 0.0
        %520 = vmatprep.subr.mxu0 0.0
        %521 = vmatpush2.msra.mxu0 0.0
        %522 = vmatprep.subr.mxu0 0.0
        %523 = vmatpush2.msra.mxu0 0.0
        %524 = vmatprep.mubr.f32.mxu0 0.0
        %525 = vmatmul.mubr.f32.gmra.mxu0 %v378
        %v526 = vpop.f32.mrf.mxu0
        %v527 = vadd.f32 0.0, %v526
        %v528 = vpop.f32.mrf.mxu0
        %v529 = vadd.f32 0.0, %v528
        %530 = vmatprep.mubr.f32.mxu0 0.0
        %531 = vmatmul.mubr.f32.gmra.mxu0 %v381
        %v532 = vpop.f32.mrf.mxu0
        %v533 = vadd.f32 0.0, %v532
        %v534 = vpop.f32.mrf.mxu0
        %v535 = vadd.f32 0.0, %v534
        %536 = vdwg.mxu0
        %vm537 = vcmp.ne.f32.partialorder %v346, 0.0
        %vm538 = vcmp.ne.f32.partialorder %v347, 0.0
        %vm539 = vcmp.ne.f32.partialorder %v348, 0.0
        %vm540 = vcmp.ne.f32.partialorder %v349, 0.0
        %vm541 = vcmp.ne.f32.partialorder %v350, 0.0
        %vm542 = vcmp.ne.f32.partialorder %v351, 0.0
        %vm543 = vcmp.ne.f32.partialorder %v352, 0.0
        %vm544 = vcmp.ne.f32.partialorder %v353, 0.0
        %v545 = vsel %vm370, 1, 0
        %v546 = vsel %vm371, 1, 0
        %v547 = vsel %vm372, 1, 0
        %v548 = vsel %vm373, 1, 0
        %vm549 = vcmp.eq.s32.totalorder %v545, 1
        %vm550 = vcmp.eq.s32.totalorder %v546, 1
        %vm551 = vcmp.eq.s32.totalorder %v547, 1
        %vm552 = vcmp.eq.s32.totalorder %v548, 1
        %vm553 = vmand %vm537, %vm549
        %vm554 = vmand %vm538, %vm550
        %vm555 = vmand %vm539, %vm551
        %vm556 = vmand %vm540, %vm552
        %vm557 = vmand %vm541, %vm549
        %vm558 = vmand %vm542, %vm550
        %vm559 = vmand %vm543, %vm551
        %vm560 = vmand %vm544, %vm552
        %v561 = vsub.f32 %v346, %v450
        %v562 = vsub.f32 %v347, %v452
        %v563 = vsub.f32 %v348, %v527
        %v564 = vsub.f32 %v349, %v529
        %v565 = vsub.f32 %v350, %v456
        %v566 = vsub.f32 %v351, %v458
        %v567 = vsub.f32 %v352, %v533
        %v568 = vsub.f32 %v353, %v535
        %v569 = vsel %vm553, %v561, 0.0
        %v570 = vsel %vm554, %v562, 0.0
        %v571 = vsel %vm555, %v563, 0.0
        %v572 = vsel %vm556, %v564, 0.0
        %v573 = vsel %vm557, %v565, 0.0
        %v574 = vsel %vm558, %v566, 0.0
        %v575 = vsel %vm559, %v567, 0.0
        %v576 = vsel %vm560, %v568, 0.0
        %v577 = vmul.f32 %v569, %v569
        %v578 = vmul.f32 %v570, %v570
        %v579 = vmul.f32 %v571, %v571
        %v580 = vmul.f32 %v572, %v572
        %v581 = vmul.f32 %v573, %v573
        %v582 = vmul.f32 %v574, %v574
        %v583 = vmul.f32 %v575, %v575
        %v584 = vmul.f32 %v576, %v576
        %v585 = vmul.f32 %v354, %v354
        %v586 = vmul.f32 %v355, %v355
        %v587 = vmul.f32 %v356, %v356
        %v588 = vmul.f32 %v357, %v357
        %v589 = vsel %vm549, %v585, 0.0
        %v590 = vsel %vm550, %v586, 0.0
        %v591 = vsel %vm551, %v587, 0.0
        %v592 = vsel %vm552, %v588, 0.0
        %v593 = vadd.f32 %v577, %v578
        %v594 = vadd.f32 %v581, %v582
        %v595 = vadd.f32 %v589, %v590
        %v596 = vadd.f32 %v593, %v579
        %v597 = vadd.f32 %v594, %v583
        %v598 = vadd.f32 %v595, %v591
        %v599 = vadd.f32 %v596, %v580
        %v600 = vadd.f32 %v597, %v584
        %v601 = vadd.f32 %v598, %v592
        %v602 = vld [vmem:[%s314] sm:$0xff]
        %v603 = vld [vmem:[%s314 + $0x8] sm:$0xff]
        %v604 = vadd.f32 %v602, %v599
        %v605 = vadd.f32 %v603, %v600
        %606 = vst [vmem:[%s314] sm:$0xff] %v604
        %607 = vst [vmem:[%s314 + $0x8] sm:$0xff] %v605
        %v608 = vld [vmem:[%s321] sm:$0xff]
        %v609 = vadd.f32 %v608, %v601
        %610 = vst [vmem:[%s321] sm:$0xff] %v609
        %s611 = sand.u32 %s155, 1
        %s612 = scalar_lea.sflag [#allocation5], %s611
        %s613 = sand.u32 %s155, 1
        %s614 = smul.addr %s613, 16
        %s615 = scalar_lea.vmem [#allocation8], %s614
        %s616 = sand.u32 %s181, 1
        %s617 = scalar_lea.sflag [#allocation10], %s616
        %s618 = sand.u32 %s181, 1
        %s619 = smul.addr %s618, 8
        %s620 = scalar_lea.vmem [#allocation9], %s619
        // Predicated region
        $region49: #{tpu_custom_call.1} parent=35 // pred_check
          %p621 = pneg %p165
        $region50: #{tpu_custom_call.1} parent=35 // pred_check_branch
          %623 = sbr.rel (%p621) target = $region52
        $region51: #{tpu_custom_call.1} parent=35 // pred_region
          %s625 = ssub.s32 256, 256
          %626 = vsyncadd %s612, %s625
          %s627 = smul.addr %s33, 2
          %s628 = smul.addr %s627, 128
          %s629 = scalar_lea.hbm %s4, %s628
          %s630 = sshll.u32 %s615, 4
          %s631 = int_to_ptr.vmem [resolvable:$true] %s630
          %636 = dma.vmem_to_hbm [thread:$0]  %s631, 256, %s629, %s612, 128, 128, 8
        $region52: #{tpu_custom_call.1} parent=35 // pred_fallthru
          _
        // Predicated region
        $region53: #{tpu_custom_call.1} parent=35 // pred_check
          %p637 = pneg %p191
        $region54: #{tpu_custom_call.1} parent=35 // pred_check_branch
          %639 = sbr.rel (%p637) target = $region56
        $region55: #{tpu_custom_call.1} parent=35 // pred_region
          %s641 = ssub.s32 128, 128
          %642 = vsyncadd %s617, %s641
          %s643 = smul.addr %s33, 128
          %s644 = scalar_lea.hbm %s5, %s643
          %s646 = sshll.u32 %s620, 4
          %s647 = int_to_ptr.vmem [resolvable:$true] %s646
          %649 = dma.vmem_to_hbm [thread:$0]  %s647, 128, %s644, %s617
        $region56: #{tpu_custom_call.1} parent=35 // pred_fallthru
          _
      $region36: #{tpu_custom_call.1} parent=5 // pred_fallthru
        _
      %p650 = scmp.le.s32.totalorder 2, %s24
      // Predicated region
      $region57: #{tpu_custom_call.1} parent=5 // pred_check
        %p651 = pneg %p650
      $region58: #{tpu_custom_call.1} parent=5 // pred_check_branch
        %653 = sbr.rel (%p651) target = $region60
      $region59: #{tpu_custom_call.1} parent=5 // pred_region
        %s654 = ssub.s32 %s24, 2
        // Predicated region
        $region61: #{tpu_custom_call.1} parent=59 // pred_check
          %p655 = pneg %p171
        $region62: #{tpu_custom_call.1} parent=59 // pred_check_branch
          %657 = sbr.rel (%p655) target = $region64
        $region63: #{tpu_custom_call.1} parent=59 // pred_region
          %s658 = sand.u32 %s156, 1
          %s659 = scalar_lea.sflag [#allocation5], %s658
          %s660 = sand.u32 %s156, 1
          %s661 = smul.addr %s660, 16
          %s662 = scalar_lea.vmem [#allocation8], %s661
          %663 = dma.done %s659, 256
        $region64: #{tpu_custom_call.1} parent=59 // pred_fallthru
          _
        // Predicated region
        $region65: #{tpu_custom_call.1} parent=59 // pred_check
          %p664 = pneg %p197
        $region66: #{tpu_custom_call.1} parent=59 // pred_check_branch
          %666 = sbr.rel (%p664) target = $region68
        $region67: #{tpu_custom_call.1} parent=59 // pred_region
          %s667 = sand.u32 %s182, 1
          %s668 = scalar_lea.sflag [#allocation10], %s667
          %s669 = sand.u32 %s182, 1
          %s670 = smul.addr %s669, 8
          %s671 = scalar_lea.vmem [#allocation9], %s670
          %672 = dma.done %s668, 128
        $region68: #{tpu_custom_call.1} parent=59 // pred_fallthru
          _
      $region60: #{tpu_custom_call.1} parent=5 // pred_fallthru
        _
    $region6: #{tpu_custom_call.1} parent=1 // loop_footer
      %s28 = sadd.s32 1, %s24
    $region7: #{tpu_custom_call.1} parent=1 // loop_footer_branch
      %23 = sbr.rel target = $region3
    $region8: #{tpu_custom_call.1} parent=1 // loop_exit
      _
    %673 = vsyncpa [#allocation4], 1
    %s674 = scalar_lea.sflag [#allocation4], 1
    %675 = vsyncpa %s674, 1
    %676 = vsyncpa [#allocation7], 1
    %s677 = scalar_lea.sflag [#allocation7], 1
    %678 = vsyncpa %s677, 1
    %679 = vsyncpa [#allocation5], 1
    %s680 = scalar_lea.sflag [#allocation5], 1
    %681 = vsyncpa %s680, 1
    %682 = vsyncpa [#allocation10], 1
    %s683 = scalar_lea.sflag [#allocation10], 1
    %684 = vsyncpa %s683, 1

</llo_original>
